<compile_context>
chip_gen: v5e
topology: v5e:2x2
jax: 0.10.0
libtpu: 0.0.40
codegen_flags: <defaults>
</compile_context>

<pallas_src>
import functools

import jax
import jax.numpy as jnp
import numpy as np
from jax.experimental import pallas as pl
from jax.experimental.pallas import tpu as pltpu


def _round_up(x, m):
    return ((x + m - 1) // m) * m


def _cdiv(a, b):
    return -(-a // b)


def _device_kind():
    try:
        return jax.devices()[0].device_kind.lower()
    except Exception:
        return ""


def _is_v7():
    k = _device_kind()
    return ("v7" in k) or ("7x" in k)


def _pick_tm(n_anchor):
    """Row-tile size: 256 on v6e (2x256 MXU), 128 on v5e, 128 on v7x (half the
    VMEM of v6e and two TensorCores to feed).  Rounded to 32 for bf16/int8
    sublane packing."""
    kind = _device_kind()
    base = 256 if ("v6" in kind) else 128
    tm = min(base, _round_up(max(n_anchor, 1), 32))
    # On v7x make sure there are >= 2 row tiles so dimension_semantics
    # ("parallel",) can actually shard the grid across both TensorCores.
    if _is_v7() and tm > 32 and _round_up(n_anchor, tm) // tm < 2:
        tm = max(32, _round_up(_cdiv(n_anchor, 2), 32))
    return tm


def _vmem_limit_bytes(ncp, dim, tm, tc, n_chunks, feat_bytes, with_mask):
    """Explicit scoped-VMEM request with headroom (defaults are 16/32 MiB)."""
    contrast = ncp * dim * feat_bytes * 2              # resident block, 2 bufs
    side = (n_chunks * tm * tc * 1 * 2) if with_mask \
        else ((tm * 4 + n_chunks * tc * 4) * 2)        # int8 mask vs i32 labels
    temps = tm * tc * 4 * 8                            # generous f32 chunk temps
    est = contrast + side + temps + (2 << 20)
    cap = (48 << 20) if _is_v7() else (100 << 20)      # v7x: 64 MiB physical
    return int(min(max(2 * est, 32 << 20), cap))


def _row_tile_loss(i, contrast_ref, pos_chunk_fn, *, tm, tc, n_chunks,
                   n_contrast, n_anchor, inv_temp, loss_scale):
    """Loss contribution of row tile `i`, returned as a (1, 1) f32.

    Online softmax over column chunks of width tc:
      m     running row max of logits                        (tm, 1)
      l     running sum_{keep} exp(logit - m)                (tm, 1)
      s_pos running sum_{positives} logit                    (tm, 1)
      n_pos running count of positives                       (tm, 1)
    and  sum_pos(log_prob) = s_pos - n_pos * (m + log l).
    Only (tm, tc)-sized temporaries are ever live.
    """
    start = pl.multiple_of(i * tm, tm)
    a = contrast_ref[pl.ds(start, tm), :]          # (tm, D) anchors (resident)

    def chunk_update(j, carry):
        m, l, s_pos, n_pos = carry
        c0 = pl.multiple_of(j * tc, tc)
        c = contrast_ref[pl.ds(c0, tc), :]         # (tc, D)
        # anchor @ contrast_chunk.T on the MXU, f32 accumulation; RHS transpose
        # is fused into the matmul (contracting dim 1 of both operands).
        adc = jax.lax.dot_general(
            a, c, dimension_numbers=(((1,), (1,)), ((), ())),
            preferred_element_type=jnp.float32) * inv_temp        # (tm, tc)

        row_ids = i * tm + jax.lax.broadcasted_iota(jnp.int32, (tm, tc), 0)
        col_ids = c0 + jax.lax.broadcasted_iota(jnp.int32, (tm, tc), 1)
        # Boolean masks only; never materialized as f32.
        keep = jnp.logical_and(row_ids != col_ids, col_ids < n_contrast)
        pos_keep = jnp.logical_and(pos_chunk_fn(j), keep)

        # Row max taken straight over adc: padded columns contribute exactly 0
        # and log-softmax is shift-invariant, so no -inf masking pass needed.
        m_new = jnp.maximum(m, jnp.max(adc, axis=1, keepdims=True))
        alpha = jnp.exp(m - m_new)
        e = jnp.where(keep, jnp.exp(adc - m_new), 0.0)
        l_new = alpha * l + jnp.sum(e, axis=1, keepdims=True)
        s_new = s_pos + jnp.sum(jnp.where(pos_keep, adc, 0.0), axis=1,
                                keepdims=True)
        n_new = n_pos + jnp.sum(pos_keep.astype(jnp.float32), axis=1,
                                keepdims=True)
        return m_new, l_new, s_new, n_new

    init = (jnp.full((tm, 1), -jnp.inf, jnp.float32),
            jnp.zeros((tm, 1), jnp.float32),
            jnp.zeros((tm, 1), jnp.float32),
            jnp.zeros((tm, 1), jnp.float32))
    if n_chunks == 1:
        m, l, s_pos, n_pos = chunk_update(0, init)
    else:
        m, l, s_pos, n_pos = jax.lax.fori_loop(0, n_chunks, chunk_update, init)

    mask_pos_pairs = jnp.where(n_pos < 1e-6, 1.0, n_pos)
    mean_log_prob_pos = (s_pos - n_pos * (m + jnp.log(l))) / mask_pos_pairs
    row_loss = loss_scale * mean_log_prob_pos                       # (tm, 1)
    row_valid = (i * tm +
                 jax.lax.broadcasted_iota(jnp.int32, (tm, 1), 0)) < n_anchor
    return jnp.sum(jnp.where(row_valid, row_loss, 0.0), axis=0, keepdims=True)


def _supcon_labels_kernel(labels_a_ref, labels_c_ref, contrast_ref, out_ref, *,
                          tm, tc, n_chunks, n_contrast, n_anchor, inv_temp,
                          loss_scale):
    """Positive mask rebuilt in-kernel from int32 labels (no N^2 mask DMA)."""
    i = pl.program_id(0)
    la = labels_a_ref[...]                              # (tm, 1) int32

    def pos_chunk(j):
        return la == labels_c_ref[j]                    # (tm,1)==(1,tc)->(tm,tc)

    partial = _row_tile_loss(i, contrast_ref, pos_chunk, tm=tm, tc=tc,
                             n_chunks=n_chunks, n_contrast=n_contrast,
                             n_anchor=n_anchor, inv_temp=inv_temp,
                             loss_scale=loss_scale)
    out_ref[...] = jnp.broadcast_to(partial, (8, 128)).astype(jnp.float32)


def _supcon_mask_kernel(mask_ref, contrast_ref, out_ref, *, tm, tc, n_chunks,
                        n_contrast, n_anchor, inv_temp, loss_scale):
    """Explicit user-mask path; mask shipped as int8 (4x less HBM than f32)."""
    i = pl.program_id(0)

    def pos_chunk(j):
        return mask_ref[j] > 0                          # (tm, tc) int8 -> bool

    partial = _row_tile_loss(i, contrast_ref, pos_chunk, tm=tm, tc=tc,
                             n_chunks=n_chunks, n_contrast=n_contrast,
                             n_anchor=n_anchor, inv_temp=inv_temp,
                             loss_scale=loss_scale)
    out_ref[...] = jnp.broadcast_to(partial, (8, 128)).astype(jnp.float32)


def supcon_loss(features, labels=None, mask=None, *, temperature=0.07,
                contrast_mode='all', base_temperature=0.07,
                column_chunk=512, feature_dtype=jnp.bfloat16):
    """Pallas implementation of SupConLoss.forward (returns a scalar).

    feature_dtype: dtype fed to the MXU.  bf16 (default) halves HBM/VMEM
    traffic; the logits then carry bf16 rounding amplified by 1/temperature.
    Pass jnp.float32 for exact parity with an f32 PyTorch run.
    column_chunk: target width of the online-softmax column chunks.
    """
    features = jnp.asarray(features)
    if features.ndim < 3:
        raise ValueError('`features` needs to be [bsz, n_views, ...]')
    if features.ndim > 3:
        features = features.reshape(features.shape[0], features.shape[1], -1)
    if labels is not None and mask is not None:
        raise ValueError('Cannot define both `labels` and `mask`')
    if contrast_mode not in ('one', 'all'):
        raise ValueError(f'Unknown mode: {contrast_mode}')

    bsz, n_views, dim = features.shape
    anchor_count = 1 if contrast_mode == 'one' else n_views
    n_anchor = anchor_count * bsz
    n_contrast = n_views * bsz

    # torch.cat(torch.unbind(features, dim=1), dim=0) == view-major ordering.
    contrast_feature = jnp.transpose(features, (1, 0, 2)).reshape(
        n_views * bsz, dim)

    # --- tiling / padding -------------------------------------------------
    tm = _pick_tm(n_anchor)
    n_anchor_pad = _round_up(n_anchor, tm)
    num_tiles = n_anchor_pad // tm
    # Contrast rows: lane-aligned, >= n_anchor_pad (anchors are sliced from the
    # resident contrast block), split into n_chunks column chunks of width tc.
    ncp0 = _round_up(max(n_contrast, n_anchor_pad), 128)
    tc_target = max(128, _round_up(int(column_chunk), 128))
    n_chunks = max(1, _cdiv(ncp0, tc_target))
    tc = _round_up(_cdiv(ncp0, n_chunks), 128)
    ncp = n_chunks * tc

    feat_dt = jnp.dtype(feature_dtype)
    contrast_pad = jnp.zeros((ncp, dim), feat_dt).at[:n_contrast].set(
        contrast_feature.astype(feat_dt))

    inv_temp = 1.0 / float(temperature)
    loss_scale = -(float(temperature) / float(base_temperature))

    out_shape = jax.ShapeDtypeStruct((num_tiles * 8, 128), jnp.float32)
    out_spec = pl.BlockSpec((8, 128), lambda i: (i, 0))
    contrast_spec = pl.BlockSpec((ncp, dim), lambda i: (0, 0))  # resident block

    kwargs = dict(tm=tm, tc=tc, n_chunks=n_chunks, n_contrast=n_contrast,
                  n_anchor=n_anchor, inv_temp=inv_temp, loss_scale=loss_scale)
    cost = pl.CostEstimate(
        flops=2 * n_anchor_pad * ncp * dim,
        transcendentals=n_anchor_pad * ncp,
        bytes_accessed=int(ncp * dim * feat_dt.itemsize
                           + n_anchor_pad * (ncp if mask is not None else 8)
                           + num_tiles * 8 * 128 * 4))

    if mask is None:
        # labels path (incl. SimCLR: eye(bsz) == "label = sample index").
        if labels is None:
            labels = jnp.arange(bsz, dtype=jnp.int32)
        else:
            labels = jnp.asarray(labels).reshape(-1).astype(jnp.int32)
            if labels.shape[0] != bsz:
                raise ValueError('Num of labels does not match num of features')
        labels_c = jnp.tile(labels, n_views)           # contrast-row labels
        labels_a = jnp.tile(labels, anchor_count)      # anchor-row labels
        labels_a_pad = jnp.full((n_anchor_pad, 1), -1, jnp.int32).at[
            :n_anchor, 0].set(labels_a)
        labels_c_pad = jnp.full((ncp,), -2, jnp.int32).at[
            :n_contrast].set(labels_c).reshape(n_chunks, 1, tc)

        kernel = functools.partial(_supcon_labels_kernel, **kwargs)
        vmem = _vmem_limit_bytes(ncp, dim, tm, tc, n_chunks, feat_dt.itemsize,
                                 with_mask=False)
        partials = pl.pallas_call(
            kernel,
            out_shape=out_shape,
            grid_spec=pltpu.PrefetchScalarGridSpec(
                num_scalar_prefetch=0,
                grid=(num_tiles,),
                in_specs=[
                    pl.BlockSpec((tm, 1), lambda i: (i, 0)),              # anchor labels
                    pl.BlockSpec((n_chunks, 1, tc), lambda i: (0, 0, 0)),  # contrast labels
                    contrast_spec,                                         # features
                ],
                out_specs=out_spec),
            compiler_params=pltpu.CompilerParams(
                dimension_semantics=("parallel",), vmem_limit_bytes=vmem),
            cost_estimate=cost,
        )(labels_a_pad, labels_c_pad, contrast_pad)
    else:
        # explicit-mask path: tile the user mask, ship as int8.
        # TODO(synk): non-binary (weighted) masks are binarized here.
        mask_full = jnp.tile(jnp.asarray(mask).astype(jnp.float32),
                             (anchor_count, n_views))
        mask_i8 = (mask_full > 0.5).astype(jnp.int8)
        mask_pad = jnp.zeros((n_anchor_pad, ncp), jnp.int8).at[
            :n_anchor, :n_contrast].set(mask_i8)
        mask_pad = mask_pad.reshape(n_anchor_pad, n_chunks, tc).transpose(
            1, 0, 2)                                   # (n_chunks, rows, tc)

        kernel = functools.partial(_supcon_mask_kernel, **kwargs)
        vmem = _vmem_limit_bytes(ncp, dim, tm, tc, n_chunks, feat_dt.itemsize,
                                 with_mask=True)
        partials = pl.pallas_call(
            kernel,
            out_shape=out_shape,
            grid_spec=pltpu.PrefetchScalarGridSpec(
                num_scalar_prefetch=0,
                grid=(num_tiles,),
                in_specs=[
                    pl.BlockSpec((n_chunks, tm, tc), lambda i: (0, i, 0)),  # mask
                    contrast_spec,                                          # features
                ],
                out_specs=out_spec),
            compiler_params=pltpu.CompilerParams(
                dimension_semantics=("parallel",), vmem_limit_bytes=vmem),
            cost_estimate=cost,
        )(mask_pad, contrast_pad)

    # loss.view(anchor_count, bsz).mean() == sum over anchors / n_anchor
    per_tile = partials.reshape(num_tiles, 8, 128)[:, 0, 0]
    return jnp.sum(per_tile) / jnp.float32(n_anchor)


def _supcon_loss_ref(features, labels=None, mask=None, *, temperature=0.07,
                     contrast_mode='all', base_temperature=0.07,
                     round_to_bf16=True):
    """Pure-JAX reference mirroring the PyTorch forward.  With round_to_bf16
    the features are rounded to bf16 first, matching the kernel's default
    bf16 MXU feed (the rest of the math is f32 in both)."""
    features = jnp.asarray(features, jnp.float32)
    if round_to_bf16:
        features = features.astype(jnp.bfloat16).astype(jnp.float32)
    bsz, n_views, dim = features.shape
    if labels is None and mask is None:
        mask = jnp.eye(bsz, dtype=jnp.float32)
    elif labels is not None:
        labels = jnp.asarray(labels).reshape(-1, 1)
        mask = (labels == labels.T).astype(jnp.float32)
    else:
        mask = jnp.asarray(mask).astype(jnp.float32)
    contrast_feature = jnp.transpose(features, (1, 0, 2)).reshape(
        n_views * bsz, dim)
    if contrast_mode == 'one':
        anchor_feature, anchor_count = features[:, 0], 1
    else:
        anchor_feature, anchor_count = contrast_feature, n_views
    adc = (anchor_feature @ contrast_feature.T) / temperature
    logits = adc - jnp.max(adc, axis=1, keepdims=True)
    mask = jnp.tile(mask, (anchor_count, n_views))
    n_anchor = anchor_count * bsz
    logits_mask = 1.0 - jnp.eye(n_anchor, n_views * bsz, dtype=jnp.float32)
    mask = mask * logits_mask
    exp_logits = jnp.exp(logits) * logits_mask
    log_prob = logits - jnp.log(exp_logits.sum(1, keepdims=True))
    mpp = mask.sum(1)
    mpp = jnp.where(mpp < 1e-6, 1.0, mpp)
    mlpp = (mask * log_prob).sum(1) / mpp
    loss = -(temperature / base_temperature) * mlpp
    return loss.reshape(anchor_count, bsz).mean()


if __name__ == "__main__":
    key = jax.random.PRNGKey(0)
    kf, kl, kf2, kl2 = jax.random.split(key, 4)

    # Small shapes implied by the module: [bsz, n_views, dim].
    bsz, n_views, dim = 8, 2, 32
    features = jax.random.normal(kf, (bsz, n_views, dim), dtype=jnp.float32)
    # SupCon conventionally uses L2-normalized features.
    features = features / jnp.linalg.norm(features, axis=-1, keepdims=True)
    labels = jax.random.randint(kl, (bsz,), 0, 4)

    rtol, atol = 5e-4, 1e-4

    # 1) supervised (labels) path
    loss = jax.block_until_ready(supcon_loss(features, labels=labels))
    ref = _supcon_loss_ref(features, labels=labels)
    np.testing.assert_allclose(np.asarray(loss), np.asarray(ref),
                               rtol=rtol, atol=atol)

    # 2) unsupervised (SimCLR) path
    loss_simclr = jax.block_until_ready(supcon_loss(features))
    ref_simclr = _supcon_loss_ref(features)
    np.testing.assert_allclose(np.asarray(loss_simclr), np.asarray(ref_simclr),
                               rtol=rtol, atol=atol)

    # 3) explicit-mask path (equivalent to the labels mask)
    user_mask = (labels[:, None] == labels[None, :]).astype(jnp.float32)
    loss_mask = jax.block_until_ready(supcon_loss(features, mask=user_mask))
    np.testing.assert_allclose(np.asarray(loss_mask), np.asarray(ref),
                               rtol=rtol, atol=atol)

    # 4) contrast_mode='one'
    loss_one = jax.block_until_ready(
        supcon_loss(features, labels=labels, contrast_mode='one'))
    ref_one = _supcon_loss_ref(features, labels=labels, contrast_mode='one')
    np.testing.assert_allclose(np.asarray(loss_one), np.asarray(ref_one),
                               rtol=rtol, atol=atol)

    # 5) exact f32 MXU feed (addresses the bf16-rounding correctness note)
    loss_f32 = jax.block_until_ready(
        supcon_loss(features, labels=labels, feature_dtype=jnp.float32))
    ref_f32 = _supcon_loss_ref(features, labels=labels, round_to_bf16=False)
    np.testing.assert_allclose(np.asarray(loss_f32), np.asarray(ref_f32),
                               rtol=rtol, atol=atol)

    # 6+7) larger batch with column_chunk=128 to exercise the online-softmax
    #      column-chunk loop (labels + explicit-mask paths).
    bsz2 = 96
    features2 = jax.random.normal(kf2, (bsz2, n_views, dim), dtype=jnp.float32)
    features2 = features2 / jnp.linalg.norm(features2, axis=-1, keepdims=True)
    labels2 = jax.random.randint(kl2, (bsz2,), 0, 6)
    loss2 = jax.block_until_ready(
        supcon_loss(features2, labels=labels2, column_chunk=128))
    ref2 = _supcon_loss_ref(features2, labels=labels2)
    np.testing.assert_allclose(np.asarray(loss2), np.asarray(ref2),
                               rtol=rtol, atol=atol)

    user_mask2 = (labels2[:, None] == labels2[None, :]).astype(jnp.float32)
    loss2_mask = jax.block_until_ready(
        supcon_loss(features2, mask=user_mask2, column_chunk=128))
    np.testing.assert_allclose(np.asarray(loss2_mask), np.asarray(ref2),
                               rtol=rtol, atol=atol)

    print("KERNEL_OK")
</pallas_src>

<mosaic_0001>
module attributes {stable_mosaic.version = 11 : i64} {
  func.func @_supcon_labels_kernel(%arg0: i32, %arg1: memref<32x1xi32, #tpu.memory_space<vmem>>, %arg2: memref<1x1x128xi32, #tpu.memory_space<vmem>>, %arg3: memref<128x32xbf16, #tpu.memory_space<vmem>>, %arg4: memref<8x128xf32, #tpu.memory_space<vmem>>) attributes {dimension_semantics = [#tpu.dimension_semantics<parallel>], iteration_bounds = array<i64: 1>, scalar_prefetch = 0 : i64, scratch_operands = 0 : i64, tpu.core_type = #tpu.core_type<tc>, window_params = [{transform_indices = @transform_0, window_bounds = array<i64: 32, 1>}, {pipeline_mode = #tpu.pipeline_mode<synchronous>, transform_indices = @transform_1, window_bounds = array<i64: 1, 1, 128>}, {pipeline_mode = #tpu.pipeline_mode<synchronous>, transform_indices = @transform_2, window_bounds = array<i64: 128, 32>}, {transform_indices = @transform_3, window_bounds = array<i64: 8, 128>}]} {
    %c0 = arith.constant 0 : index
    %c0_0 = arith.constant 0 : index
    %0 = vector.load %arg1[%c0, %c0_0] : memref<32x1xi32, #tpu.memory_space<vmem>>, vector<32x1xi32>
    %c32_i32 = arith.constant 32 : i32
    %1 = arith.muli %arg0, %c32_i32 : i32
    %2 = tpu.assume_multiple %1, 32 : i32
    %3 = arith.index_cast %2 : i32 to index
    %c0_1 = arith.constant 0 : index
    %4 = vector.load %arg3[%3, %c0_1] : memref<128x32xbf16, #tpu.memory_space<vmem>>, vector<32x32xbf16>
    %cst = arith.constant 0xFF800000 : f32
    %5 = vector.broadcast %cst : f32 to vector<32x1xf32>
    %cst_2 = arith.constant 0.000000e+00 : f32
    %6 = vector.broadcast %cst_2 : f32 to vector<32x1xf32>
    %cst_3 = arith.constant 0.000000e+00 : f32
    %7 = vector.broadcast %cst_3 : f32 to vector<32x1xf32>
    %cst_4 = arith.constant 0.000000e+00 : f32
    %8 = vector.broadcast %cst_4 : f32 to vector<32x1xf32>
    %c0_i32 = arith.constant 0 : i32
    %9 = tpu.assume_multiple %c0_i32, 128 : i32
    %10 = arith.index_cast %9 : i32 to index
    %c0_5 = arith.constant 0 : index
    %11 = vector.load %arg3[%10, %c0_5] : memref<128x32xbf16, #tpu.memory_space<vmem>>, vector<128x32xbf16>
    %cst_6 = arith.constant dense<0.000000e+00> : vector<32x128xf32>
    %12 = tpu.matmul %4, %11, %cst_6 {dimension_numbers = #tpu.dot_dimension_numbers<[1], [1], [0], [0], [0, 0, 1, 0], [], []>} : vector<32x32xbf16>, vector<128x32xbf16>, vector<32x128xf32> -> vector<32x128xf32>
    %cst_7 = arith.constant 14.2857141 : f32
    %13 = vector.broadcast %cst_7 : f32 to vector<32x128xf32>
    %14 = arith.mulf %12, %13 : vector<32x128xf32>
    %c32_i32_8 = arith.constant 32 : i32
    %15 = arith.muli %arg0, %c32_i32_8 : i32
    %16 = tpu.iota {dimensions = array<i32: 0>} : vector<32x128xi32>
    %17 = vector.broadcast %15 : i32 to vector<32x128xi32>
    %18 = arith.addi %17, %16 : vector<32x128xi32>
    %19 = tpu.iota {dimensions = array<i32: 1>} : vector<32x128xi32>
    %20 = vector.broadcast %9 : i32 to vector<32x128xi32>
    %21 = arith.addi %20, %19 : vector<32x128xi32>
    %22 = arith.cmpi ne, %18, %21 : vector<32x128xi32>
    %c16_i32 = arith.constant 16 : i32
    %23 = vector.broadcast %c16_i32 : i32 to vector<32x128xi32>
    %24 = arith.cmpi slt, %21, %23 : vector<32x128xi32>
    %25 = arith.andi %22, %24 : vector<32x128xi1>
    %c0_9 = arith.constant 0 : index
    %c0_10 = arith.constant 0 : index
    %c0_11 = arith.constant 0 : index
    %26 = vector.load %arg2[%c0_9, %c0_10, %c0_11] : memref<1x1x128xi32, #tpu.memory_space<vmem>>, vector<1x1x128xi32>
    %27 = vector.shape_cast %26 : vector<1x1x128xi32> to vector<1x128xi32>
    %28 = vector.broadcast %0 : vector<32x1xi32> to vector<32x128xi32>
    %29 = vector.broadcast %27 : vector<1x128xi32> to vector<32x128xi32>
    %30 = arith.cmpi eq, %28, %29 : vector<32x128xi32>
    %31 = arith.andi %30, %25 : vector<32x128xi1>
    %cst_12 = arith.constant dense<0xFF800000> : vector<32xf32>
    %32 = vector.multi_reduction <maximumf>, %14, %cst_12 [1] : vector<32x128xf32> to vector<32xf32>
    %33 = vector.shape_cast %32 : vector<32xf32> to vector<32x1xf32>
    %34 = arith.maximumf %5, %33 : vector<32x1xf32>
    %35 = arith.subf %5, %34 : vector<32x1xf32>
    %36 = math.exp %35 : vector<32x1xf32>
    %37 = vector.broadcast %34 : vector<32x1xf32> to vector<32x128xf32>
    %38 = arith.subf %14, %37 : vector<32x128xf32>
    %39 = math.exp %38 : vector<32x128xf32>
    %cst_13 = arith.constant 0.000000e+00 : f32
    %40 = vector.broadcast %cst_13 : f32 to vector<32x128xf32>
    %41 = arith.select %25, %39, %40 : vector<32x128xi1>, vector<32x128xf32>
    %42 = arith.mulf %36, %6 : vector<32x1xf32>
    %cst_14 = arith.constant dense<0.000000e+00> : vector<32xf32>
    %43 = vector.multi_reduction <add>, %41, %cst_14 [1] : vector<32x128xf32> to vector<32xf32>
    %44 = vector.shape_cast %43 : vector<32xf32> to vector<32x1xf32>
    %45 = arith.addf %42, %44 : vector<32x1xf32>
    %cst_15 = arith.constant 0.000000e+00 : f32
    %46 = vector.broadcast %cst_15 : f32 to vector<32x128xf32>
    %47 = arith.select %31, %14, %46 : vector<32x128xi1>, vector<32x128xf32>
    %cst_16 = arith.constant dense<0.000000e+00> : vector<32xf32>
    %48 = vector.multi_reduction <add>, %47, %cst_16 [1] : vector<32x128xf32> to vector<32xf32>
    %49 = vector.shape_cast %48 : vector<32xf32> to vector<32x1xf32>
    %50 = arith.addf %7, %49 : vector<32x1xf32>
    %51 = arith.extui %31 : vector<32x128xi1> to vector<32x128xi32>
    %52 = arith.sitofp %51 : vector<32x128xi32> to vector<32x128xf32>
    %cst_17 = arith.constant dense<0.000000e+00> : vector<32xf32>
    %53 = vector.multi_reduction <add>, %52, %cst_17 [1] : vector<32x128xf32> to vector<32xf32>
    %54 = vector.shape_cast %53 : vector<32xf32> to vector<32x1xf32>
    %55 = arith.addf %8, %54 : vector<32x1xf32>
    %cst_18 = arith.constant 9.99999997E-7 : f32
    %56 = vector.broadcast %cst_18 : f32 to vector<32x1xf32>
    %57 = arith.cmpf olt, %55, %56 : vector<32x1xf32>
    %cst_19 = arith.constant 1.000000e+00 : f32
    %58 = vector.broadcast %cst_19 : f32 to vector<32x1xf32>
    %59 = arith.select %57, %58, %55 : vector<32x1xi1>, vector<32x1xf32>
    %60 = math.log %45 : vector<32x1xf32>
    %61 = arith.addf %34, %60 : vector<32x1xf32>
    %62 = arith.mulf %55, %61 : vector<32x1xf32>
    %63 = arith.subf %50, %62 : vector<32x1xf32>
    %64 = arith.divf %63, %59 : vector<32x1xf32>
    %cst_20 = arith.constant -1.000000e+00 : f32
    %65 = vector.broadcast %cst_20 : f32 to vector<32x1xf32>
    %66 = arith.mulf %65, %64 : vector<32x1xf32>
    %c32_i32_21 = arith.constant 32 : i32
    %67 = arith.muli %arg0, %c32_i32_21 : i32
    %68 = tpu.iota {dimensions = array<i32: 0>} : vector<32x1xi32>
    %69 = vector.broadcast %67 : i32 to vector<32x1xi32>
    %70 = arith.addi %69, %68 : vector<32x1xi32>
    %c16_i32_22 = arith.constant 16 : i32
    %71 = vector.broadcast %c16_i32_22 : i32 to vector<32x1xi32>
    %72 = arith.cmpi slt, %70, %71 : vector<32x1xi32>
    %cst_23 = arith.constant 0.000000e+00 : f32
    %73 = vector.broadcast %cst_23 : f32 to vector<32x1xf32>
    %74 = arith.select %72, %66, %73 : vector<32x1xi1>, vector<32x1xf32>
    %cst_24 = arith.constant dense<0.000000e+00> : vector<1xf32>
    %75 = vector.multi_reduction <add>, %74, %cst_24 [0] : vector<32x1xf32> to vector<1xf32>
    %76 = vector.shape_cast %75 : vector<1xf32> to vector<1x1xf32>
    %77 = vector.shape_cast %76 : vector<1x1xf32> to vector<1x1xf32>
    %78 = vector.broadcast %77 : vector<1x1xf32> to vector<8x128xf32>
    %c0_25 = arith.constant 0 : index
    %c0_26 = arith.constant 0 : index
    %79 = vector.load %arg4[%c0_25, %c0_26] : memref<8x128xf32, #tpu.memory_space<vmem>>, vector<8x128xf32>
    tpu.vector_store %arg4[%c0_25, %c0_26], %78 {strides = array<i32>} : memref<8x128xf32, #tpu.memory_space<vmem>>, vector<8x128xf32>,
    return
  }
  func.func @transform_0(%arg0: i32) -> (i32, i32) {
    %c0_i32 = arith.constant 0 : i32
    %c0_i32_0 = arith.constant 0 : i32
    return %arg0, %c0_i32 : i32, i32
  }
  func.func @transform_1(%arg0: i32) -> (i32, i32, i32) {
    %c0_i32 = arith.constant 0 : i32
    %c0_i32_0 = arith.constant 0 : i32
    %c0_i32_1 = arith.constant 0 : i32
    %c0_i32_2 = arith.constant 0 : i32
    return %c0_i32, %c0_i32_0, %c0_i32_1 : i32, i32, i32
  }
  func.func @transform_2(%arg0: i32) -> (i32, i32) {
    %c0_i32 = arith.constant 0 : i32
    %c0_i32_0 = arith.constant 0 : i32
    %c0_i32_1 = arith.constant 0 : i32
    return %c0_i32, %c0_i32_0 : i32, i32
  }
  func.func @transform_3(%arg0: i32) -> (i32, i32) {
    %c0_i32 = arith.constant 0 : i32
    %c0_i32_0 = arith.constant 0 : i32
    return %arg0, %c0_i32 : i32, i32
  }
}

</mosaic_0001>

<llo_original>
// kernel: tpu_custom_call.1
$region0: #{tpu_custom_call.1}
  #allocation0 [shape = 'u32[]', space=smem, size = 0x4, offset = 0x4, fixed_abs, tag = 'smem constant byte address 0x4 - core index']
  #allocation1 [shape = 'u32[72,128]{1,0:T(1,128)}', space=vmem, size = 0x9000, scoped, tag = 'internal scratch']
  %s0 = inlined_call_operand.vmem [shape: s32[32,1], index: 0, kind: input, shape index: {}]
  %s1 = inlined_call_operand.vmem [shape: s32[1,1,128], index: 1, kind: input, shape index: {}]
  %s2 = inlined_call_operand.vmem [shape: bf16[128,32], index: 2, kind: input, shape index: {}]
  %s3 = inlined_call_operand.hbm [shape: f32[8,128], index: 3, kind: output, shape index: {}]
  %s4 = sld [smem:[#allocation0]]
  $region22: #{tpu_custom_call.1} parent=0
    _
  %s6 = ssub.s32 1, %s4
  %s7 = scalar_select 0, %s6, %s4
  $region1: #{tpu_custom_call.1} parent=0
    #allocation2 [shape = 'u8[4096]{0}', space=vmem, size = 0x1000, scoped, tag = 'output window, operand 0, single buffered']
    #allocation3 [shape = 's32[1]{0}', space=sflag, size = 0x4, scoped, tag = 'scoped memory for tpu_custom_call.1']
    %8 = vsyncpa [#allocation3], 0
    // Predicated region
    $region2: #{tpu_custom_call.1} parent=1 // pred_check
      _
    $region3: #{tpu_custom_call.1} parent=1 // pred_check_branch
      %10 = sbr.rel (0) target = $region5
    $region4: #{tpu_custom_call.1} parent=1 // pred_region
      _
    $region5: #{tpu_custom_call.1} parent=1 // pred_fallthru
      _
    // Predicated region
    $region6: #{tpu_custom_call.1} parent=1 // pred_check
      _
    $region7: #{tpu_custom_call.1} parent=1 // pred_check_branch
      %12 = sbr.rel (0) target = $region9
    $region8: #{tpu_custom_call.1} parent=1 // pred_region
      _
    $region9: #{tpu_custom_call.1} parent=1 // pred_fallthru
      _
    // Predicated region
    $region10: #{tpu_custom_call.1} parent=1 // pred_check
      _
    $region11: #{tpu_custom_call.1} parent=1 // pred_check_branch
      %14 = sbr.rel (0) target = $region13
    $region12: #{tpu_custom_call.1} parent=1 // pred_region
      _
    $region13: #{tpu_custom_call.1} parent=1 // pred_fallthru
      _
    %v15 = vld [vmem:[%s0] sm:$0xff]
    %v16 = vld [vmem:[%s0 + $0x8] sm:$0xff]
    %v17 = vld [vmem:[%s0 + $0x10] sm:$0xff]
    %v18 = vld [vmem:[%s0 + $0x18] sm:$0xff]
    %s19 = smul.u32 0, 32
    %s20 = sshra.s32 %s19, 3
    %s21 = sand.u32 %s19, 7
    %s22 = smul.addr %s20, 4
    %s23 = scalar_lea.vmem %s2, %s22
    %v24 = vld [vmem:[%s23] sm:$0xf]
    %v25 = vld [vmem:[%s23 + $0x4] sm:$0xf]
    %v26 = vld [vmem:[%s23 + $0x8] sm:$0xf]
    %v27 = vld [vmem:[%s23 + $0xc] sm:$0xf]
    %v28 = vld [vmem:[%s2] sm:$0xf]
    %v29 = vld [vmem:[%s2 + $0x4] sm:$0xf]
    %v30 = vld [vmem:[%s2 + $0x8] sm:$0xf]
    %v31 = vld [vmem:[%s2 + $0xc] sm:$0xf]
    %v32 = vld [vmem:[%s2 + $0x10] sm:$0xf]
    %v33 = vld [vmem:[%s2 + $0x14] sm:$0xf]
    %v34 = vld [vmem:[%s2 + $0x18] sm:$0xf]
    %v35 = vld [vmem:[%s2 + $0x1c] sm:$0xf]
    %v36 = vld [vmem:[%s2 + $0x20] sm:$0xf]
    %v37 = vld [vmem:[%s2 + $0x24] sm:$0xf]
    %v38 = vld [vmem:[%s2 + $0x28] sm:$0xf]
    %v39 = vld [vmem:[%s2 + $0x2c] sm:$0xf]
    %v40 = vld [vmem:[%s2 + $0x30] sm:$0xf]
    %v41 = vld [vmem:[%s2 + $0x34] sm:$0xf]
    %v42 = vld [vmem:[%s2 + $0x38] sm:$0xf]
    %v43 = vld [vmem:[%s2 + $0x3c] sm:$0xf]
    %v48 = vunpack.c.l.b16 %v24
    %v49 = vunpack.c.l.b16 %v25
    %v50 = vunpack.c.l.b16 %v26
    %v51 = vunpack.c.l.b16 %v27
    %v52 = vpack.c.b16 %v49, %v48
    %v53 = vpack.c.b16 %v51, %v50
    %v70 = vunpack.c.l.b16 %v28
    %v71 = vunpack.c.l.b16 %v29
    %v72 = vunpack.c.l.b16 %v30
    %v73 = vunpack.c.l.b16 %v31
    %v74 = vunpack.c.l.b16 %v32
    %v75 = vunpack.c.l.b16 %v33
    %v76 = vunpack.c.l.b16 %v34
    %v77 = vunpack.c.l.b16 %v35
    %v78 = vunpack.c.l.b16 %v36
    %v79 = vunpack.c.l.b16 %v37
    %v80 = vunpack.c.l.b16 %v38
    %v81 = vunpack.c.l.b16 %v39
    %v82 = vunpack.c.l.b16 %v40
    %v83 = vunpack.c.l.b16 %v41
    %v84 = vunpack.c.l.b16 %v42
    %v85 = vunpack.c.l.b16 %v43
    %v86 = vpack.c.b16 %v71, %v70
    %v87 = vpack.c.b16 %v73, %v72
    %v88 = vpack.c.b16 %v75, %v74
    %v89 = vpack.c.b16 %v77, %v76
    %v90 = vpack.c.b16 %v79, %v78
    %v91 = vpack.c.b16 %v81, %v80
    %v92 = vpack.c.b16 %v83, %v82
    %v93 = vpack.c.b16 %v85, %v84
    %vm94 = vcmask 261120
    %v96 = vsel %vm94, %v52, 0
    %v99 = vsel %vm94, %v53, 0
    %v102 = vsel %vm94, %v86, 0
    %v105 = vsel %vm94, %v87, 0
    %v108 = vsel %vm94, %v88, 0
    %v111 = vsel %vm94, %v89, 0
    %v114 = vsel %vm94, %v90, 0
    %v117 = vsel %vm94, %v91, 0
    %v120 = vsel %vm94, %v92, 0
    %v123 = vsel %vm94, %v93, 0
    %125 = vmatpush.bf16.xpose.msra.mxu0 %v123
    %126 = vmatpush.bf16.xpose.msra.mxu0 %v120
    %127 = vmatpush.bf16.xpose.msra.mxu0 %v117
    %128 = vmatpush.bf16.xpose.msra.mxu0 %v114
    %129 = vmatpush.bf16.xpose.msra.mxu0 %v111
    %130 = vmatpush.bf16.xpose.msra.mxu0 %v108
    %131 = vmatpush.bf16.xpose.msra.mxu0 %v105
    %132 = vmatpush.bf16.xpose.msra.mxu0 %v102
    %133 = vmatmul.bf16.gmra.mxu0 %v96
    %v134 = vpop.f32.mrf.mxu0
    %v135 = vadd.f32 0.0, %v134
    %v136 = vpop.f32.mrf.mxu0
    %v137 = vadd.f32 0.0, %v136
    %138 = vmatmul.bf16.gmra.mxu0 %v99
    %v139 = vpop.f32.mrf.mxu0
    %v140 = vadd.f32 0.0, %v139
    %v141 = vpop.f32.mrf.mxu0
    %v142 = vadd.f32 0.0, %v141
    %143 = vdwg.mxu0
    %v144 = vmul.f32 %v135, 14.285714
    %v145 = vmul.f32 %v137, 14.285714
    %v146 = vmul.f32 %v140, 14.285714
    %v147 = vmul.f32 %v142, 14.285714
    %v148 = vlaneseq
    %v149 = vshrl.u32 %v148, 7
    %v150 = vadd.s32 %v149, 8
    %v151 = vadd.s32 %v149, 16
    %v152 = vadd.s32 %v149, 24
    %v153 = vstv %s19
    %v154 = vadd.s32 %v153, %v149
    %v155 = vadd.s32 %v153, %v150
    %v156 = vadd.s32 %v153, %v151
    %v157 = vadd.s32 %v153, %v152
    %v158 = vlaneseq
    %v159 = vand.u32 %v158, 127
    %v160 = vstv 0
    %v161 = vadd.s32 %v160, %v159
    %vm162 = vcmp.ne.s32.totalorder %v154, %v161
    %vm163 = vcmp.ne.s32.totalorder %v155, %v161
    %vm164 = vcmp.ne.s32.totalorder %v156, %v161
    %vm165 = vcmp.ne.s32.totalorder %v157, %v161
    %vm166 = vcmp.lt.s32.totalorder %v161, 16
    %vm167 = vmand %vm162, %vm166
    %vm168 = vmand %vm163, %vm166
    %vm169 = vmand %vm164, %vm166
    %vm170 = vmand %vm165, %vm166
    %v171 = vld [vmem:[%s1] sm:$0x1]
    %172 = vset.pattern.permute.xlu0 0
    %173 = vperm.xlu0 %172, %v15
    %v174 = vpop.permute.xlu0 %173
    %175 = vset.pattern.permute.xlu0 0
    %176 = vperm.xlu0 %175, %v16
    %v177 = vpop.permute.xlu0 %176
    %178 = vset.pattern.permute.xlu0 0
    %179 = vperm.xlu0 %178, %v17
    %v180 = vpop.permute.xlu0 %179
    %181 = vset.pattern.permute.xlu0 0
    %182 = vperm.xlu0 %181, %v18
    %v183 = vpop.permute.xlu0 %182
    %v184 = vperm.slane %v171, 0
    %vm185 = vcmp.eq.s32.totalorder %v174, %v184
    %vm186 = vcmp.eq.s32.totalorder %v177, %v184
    %vm187 = vcmp.eq.s32.totalorder %v180, %v184
    %vm188 = vcmp.eq.s32.totalorder %v183, %v184
    %vm189 = vmand %vm185, %vm167
    %vm190 = vmand %vm186, %vm168
    %vm191 = vmand %vm187, %vm169
    %vm192 = vmand %vm188, %vm170
    %193 = vmax.xlane.f32.xlu0 %v144
    %v194 = vpop.xlane.xlu0 %193
    %195 = vmax.xlane.f32.xlu0 %v145
    %v196 = vpop.xlane.xlu0 %195
    %197 = vmax.xlane.f32.xlu0 %v146
    %v198 = vpop.xlane.xlu0 %197
    %199 = vmax.xlane.f32.xlu0 %v147
    %v200 = vpop.xlane.xlu0 %199
    %v201 = vsub.f32 -inf, %v194
    %v202 = vsub.f32 -inf, %v196
    %v203 = vsub.f32 -inf, %v198
    %v204 = vsub.f32 -inf, %v200
    %v205 = vmul.f32 %v201, 1.442695
    %v206 = vpow.pop %v205
    %v207 = vmul.f32 %v202, 1.442695
    %v208 = vpow.pop %v207
    %v209 = vmul.f32 %v203, 1.442695
    %v210 = vpow.pop %v209
    %v211 = vmul.f32 %v204, 1.442695
    %v212 = vpow.pop %v211
    %v213 = vsub.f32 %v144, %v194
    %v214 = vsub.f32 %v145, %v196
    %v215 = vsub.f32 %v146, %v198
    %v216 = vsub.f32 %v147, %v200
    %v217 = vmul.f32 %v213, 1.442695
    %v218 = vpow.pop %v217
    %v219 = vmul.f32 %v214, 1.442695
    %v220 = vpow.pop %v219
    %v221 = vmul.f32 %v215, 1.442695
    %v222 = vpow.pop %v221
    %v223 = vmul.f32 %v216, 1.442695
    %v224 = vpow.pop %v223
    %v225 = vsel %vm167, %v218, 0.0
    %v226 = vsel %vm168, %v220, 0.0
    %v227 = vsel %vm169, %v222, 0.0
    %v228 = vsel %vm170, %v224, 0.0
    %v229 = vmul.f32 %v206, 0.0
    %v230 = vmul.f32 %v208, 0.0
    %v231 = vmul.f32 %v210, 0.0
    %v232 = vmul.f32 %v212, 0.0
    %233 = vadd.xlane.f32.xlu0 %v225
    %v234 = vpop.xlane.xlu0 %233
    %235 = vadd.xlane.f32.xlu0 %v226
    %v236 = vpop.xlane.xlu0 %235
    %237 = vadd.xlane.f32.xlu0 %v227
    %v238 = vpop.xlane.xlu0 %237
    %239 = vadd.xlane.f32.xlu0 %v228
    %v240 = vpop.xlane.xlu0 %239
    %v241 = vadd.f32 %v229, %v234
    %v242 = vadd.f32 %v230, %v236
    %v243 = vadd.f32 %v231, %v238
    %v244 = vadd.f32 %v232, %v240
    %v245 = vsel %vm189, %v144, 0.0
    %v246 = vsel %vm190, %v145, 0.0
    %v247 = vsel %vm191, %v146, 0.0
    %v248 = vsel %vm192, %v147, 0.0
    %249 = vadd.xlane.f32.xlu0 %v245
    %v250 = vpop.xlane.xlu0 %249
    %251 = vadd.xlane.f32.xlu0 %v246
    %v252 = vpop.xlane.xlu0 %251
    %253 = vadd.xlane.f32.xlu0 %v247
    %v254 = vpop.xlane.xlu0 %253
    %255 = vadd.xlane.f32.xlu0 %v248
    %v256 = vpop.xlane.xlu0 %255
    %v257 = vadd.f32 %v250, 0.0
    %v258 = vadd.f32 %v252, 0.0
    %v259 = vadd.f32 %v254, 0.0
    %v260 = vadd.f32 %v256, 0.0
    %v261 = vsel %vm189, 1, 0
    %v262 = vsel %vm190, 1, 0
    %v263 = vsel %vm191, 1, 0
    %v264 = vsel %vm192, 1, 0
    %v265 = vcvt.s32.f32 %v261
    %v266 = vcvt.s32.f32 %v262
    %v267 = vcvt.s32.f32 %v263
    %v268 = vcvt.s32.f32 %v264
    %269 = vadd.xlane.f32.xlu0 %v265
    %v270 = vpop.xlane.xlu0 %269
    %271 = vadd.xlane.f32.xlu0 %v266
    %v272 = vpop.xlane.xlu0 %271
    %273 = vadd.xlane.f32.xlu0 %v267
    %v274 = vpop.xlane.xlu0 %273
    %275 = vadd.xlane.f32.xlu0 %v268
    %v276 = vpop.xlane.xlu0 %275
    %v277 = vadd.f32 %v270, 0.0
    %v278 = vadd.f32 %v272, 0.0
    %v279 = vadd.f32 %v274, 0.0
    %v280 = vadd.f32 %v276, 0.0
    %vm281 = vcmp.lt.f32.partialorder %v277, 1e-06
    %vm282 = vcmp.lt.f32.partialorder %v278, 1e-06
    %vm283 = vcmp.lt.f32.partialorder %v279, 1e-06
    %vm284 = vcmp.lt.f32.partialorder %v280, 1e-06
    %v285 = vsel %vm281, 1.0, %v277
    %v286 = vsel %vm282, 1.0, %v278
    %v287 = vsel %vm283, 1.0, %v279
    %v288 = vsel %vm284, 1.0, %v280
    %v289 = vlog2.pop %v241
    %v290 = vmul.f32 %v289, 0.6931472
    %v291 = vlog2.pop %v242
    %v292 = vmul.f32 %v291, 0.6931472
    %v293 = vlog2.pop %v243
    %v294 = vmul.f32 %v293, 0.6931472
    %v295 = vlog2.pop %v244
    %v296 = vmul.f32 %v295, 0.6931472
    %v297 = vadd.f32 %v194, %v290
    %v298 = vadd.f32 %v196, %v292
    %v299 = vadd.f32 %v198, %v294
    %v300 = vadd.f32 %v200, %v296
    %v301 = vmul.f32 %v277, %v297
    %v302 = vmul.f32 %v278, %v298
    %v303 = vmul.f32 %v279, %v299
    %v304 = vmul.f32 %v280, %v300
    %v305 = vsub.f32 %v257, %v301
    %v306 = vsub.f32 %v258, %v302
    %v307 = vsub.f32 %v259, %v303
    %v308 = vsub.f32 %v260, %v304
    %v309 = vrcp.pop %v285
    %v310 = vmul.f32 %v285, %v309
    %v311 = vsub.f32 1.0, %v310
    %v312 = vmul.f32 %v309, %v311
    %v313 = vadd.f32 %v309, %v312
    %vm314 = vweird.f32 %v285
    %vm315 = vweird.f32 %v309
    %vm316 = vmor %vm314, %vm315
    %v317 = vsel %vm316, %v309, %v313
    %v318 = vand.u32 2147483647, %v285
    %vm319 = vcmp.eq.f32.partialorder %v318, 8.507059e+37
    %v320 = vand.u32 %v285, 2147483648
    %v321 = vor.u32 1.1754944e-38, %v320
    %v322 = vsel %vm319, %v321, %v317
    %v323 = vmul.f32 %v305, %v322
    %v324 = vrcp.pop %v286
    %v325 = vmul.f32 %v286, %v324
    %v326 = vsub.f32 1.0, %v325
    %v327 = vmul.f32 %v324, %v326
    %v328 = vadd.f32 %v324, %v327
    %vm329 = vweird.f32 %v286
    %vm330 = vweird.f32 %v324
    %vm331 = vmor %vm329, %vm330
    %v332 = vsel %vm331, %v324, %v328
    %v333 = vand.u32 2147483647, %v286
    %vm334 = vcmp.eq.f32.partialorder %v333, 8.507059e+37
    %v335 = vand.u32 %v286, 2147483648
    %v336 = vor.u32 1.1754944e-38, %v335
    %v337 = vsel %vm334, %v336, %v332
    %v338 = vmul.f32 %v306, %v337
    %v339 = vrcp.pop %v287
    %v340 = vmul.f32 %v287, %v339
    %v341 = vsub.f32 1.0, %v340
    %v342 = vmul.f32 %v339, %v341
    %v343 = vadd.f32 %v339, %v342
    %vm344 = vweird.f32 %v287
    %vm345 = vweird.f32 %v339
    %vm346 = vmor %vm344, %vm345
    %v347 = vsel %vm346, %v339, %v343
    %v348 = vand.u32 2147483647, %v287
    %vm349 = vcmp.eq.f32.partialorder %v348, 8.507059e+37
    %v350 = vand.u32 %v287, 2147483648
    %v351 = vor.u32 1.1754944e-38, %v350
    %v352 = vsel %vm349, %v351, %v347
    %v353 = vmul.f32 %v307, %v352
    %v354 = vrcp.pop %v288
    %v355 = vmul.f32 %v288, %v354
    %v356 = vsub.f32 1.0, %v355
    %v357 = vmul.f32 %v354, %v356
    %v358 = vadd.f32 %v354, %v357
    %vm359 = vweird.f32 %v288
    %vm360 = vweird.f32 %v354
    %vm361 = vmor %vm359, %vm360
    %v362 = vsel %vm361, %v354, %v358
    %v363 = vand.u32 2147483647, %v288
    %vm364 = vcmp.eq.f32.partialorder %v363, 8.507059e+37
    %v365 = vand.u32 %v288, 2147483648
    %v366 = vor.u32 1.1754944e-38, %v365
    %v367 = vsel %vm364, %v366, %v362
    %v368 = vmul.f32 %v308, %v367
    %v369 = vmul.f32 %v323, -1.0
    %v370 = vmul.f32 %v338, -1.0
    %v371 = vmul.f32 %v353, -1.0
    %v372 = vmul.f32 %v368, -1.0
    %vm373 = vcmp.lt.s32.totalorder %v154, 16
    %vm374 = vcmp.lt.s32.totalorder %v155, 16
    %vm375 = vcmp.lt.s32.totalorder %v156, 16
    %vm376 = vcmp.lt.s32.totalorder %v157, 16
    %v377 = vsel %vm373, %v369, 0.0
    %v378 = vsel %vm374, %v370, 0.0
    %v379 = vsel %vm375, %v371, 0.0
    %v380 = vsel %vm376, %v372, 0.0
    %v381 = vadd.f32 %v377, %v378
    %v382 = vadd.f32 %v381, %v379
    %v383 = vadd.f32 %v382, %v380
    %v384 = vrot.slane %v383, 4
    %v385 = vadd.f32 %v383, %v384
    %v386 = vrot.slane %v385, 2
    %v387 = vadd.f32 %v385, %v386
    %v388 = vrot.slane %v387, 1
    %v389 = vadd.f32 %v387, %v388
    %390 = vst [vmem:[#allocation2] sm:$0xff] %v389
    // Predicated region
    $region14: #{tpu_custom_call.1} parent=1 // pred_check
      _
    $region15: #{tpu_custom_call.1} parent=1 // pred_check_branch
      %392 = sbr.rel (0) target = $region17
    $region16: #{tpu_custom_call.1} parent=1 // pred_region
      %394 = vsyncadd [#allocation3], 0
      %s396 = sshll.u32 [#allocation2], 4
      %s397 = int_to_ptr.vmem [resolvable:$true] %s396
      %s398 = sshll.u32 %s3, 4
      %s399 = int_to_ptr.hbm [resolvable:$true] %s398
      %401 = dma.vmem_to_hbm [thread:$0]  %s397, 128, %s399, [#allocation3]
    $region17: #{tpu_custom_call.1} parent=1 // pred_fallthru
      _
    // Predicated region
    $region18: #{tpu_custom_call.1} parent=1 // pred_check
      _
    $region19: #{tpu_custom_call.1} parent=1 // pred_check_branch
      %403 = sbr.rel (0) target = $region21
    $region20: #{tpu_custom_call.1} parent=1 // pred_region
      %405 = dma.done [#allocation3], 128
    $region21: #{tpu_custom_call.1} parent=1 // pred_fallthru
      _
    %406 = vsyncpa [#allocation3], 1

</llo_original>
